<compile_context>
chip_gen: v7x
topology: tpu7x:2x2x1
jax: 0.10.0
libtpu: 0.0.40
codegen_flags: <defaults>
</compile_context>

<pallas_src>
import jax
import jax.numpy as jnp
import numpy as np
from jax import lax
from jax.experimental import pallas as pl
from jax.experimental.pallas import tpu as pltpu

EPS = 1e-5  # nn.BatchNorm2d default eps


def basic_block_kernel(x_ref, mask_ref, w1_ref, g1_ref, b1_ref,
                       w2_ref, g2_ref, b2_ref, pool_ref, out_ref):
    # x_ref:    (R, W*Cin)         R = height-padded rows (multiple of 8), lanes = (x, ci)
    # mask_ref: (R, 1)             1.0 on interior rows, 0.0 on height-pad / tail rows
    # w1_ref:   (3*W*Cin,  W*Cout) block-banded conv1 weights (ky bands stacked on rows)
    # w2_ref:   (3*W*Cout, W*Cout) block-banded conv2 weights
    # g*/b*:    (1, W*Cout)        BN gamma/beta broadcast onto the packed (x, co) lanes
    # pool_ref: (W*Cout, W*Cout)   per-channel pooling matrix, 1/(N*H*W) folded in
    # out_ref:  (R, W*Cout)        lane-dense output rows (interior rows are the result)
    x = x_ref[...]
    mask = mask_ref[...]
    pool = pool_ref[...]
    n_rows = x.shape[0]

    def conv3x3(a, w_ref):
        # ky taps via XLU sublane rotations (wrap-around only brings in zero pad rows);
        # kx taps + width padding live inside the banded weight -> one lane-dense
        # MXU matmul per conv.
        up = pltpu.roll(a, 1, 0)            # up[r] = a[r-1]
        dn = pltpu.roll(a, n_rows - 1, 0)   # dn[r] = a[r+1]
        patch = jnp.concatenate([up, a, dn], axis=1)          # (R, 3*W*C), lane-aligned
        return jnp.dot(patch, w_ref[...], preferred_element_type=jnp.float32)

    def batchnorm(acc, g_ref, b_ref):
        # Training-mode batch stats over interior rows, fused in one pass:
        # masked per-lane sum & sum-of-squares, then pool over the W positions and
        # broadcast the per-channel stats back to lanes with one small matmul.
        am = acc * mask
        mu = jnp.dot(jnp.sum(am, axis=0, keepdims=True), pool,
                     preferred_element_type=jnp.float32)       # (1, W*Cout)
        ex2 = jnp.dot(jnp.sum(am * am, axis=0, keepdims=True), pool,
                      preferred_element_type=jnp.float32)
        var = ex2 - mu * mu
        scale = g_ref[...] * lax.rsqrt(var + EPS)              # fold affine: 1 mul + 1 add
        shift = b_ref[...] - mu * scale
        return acc * scale + shift

    h = jnp.maximum(batchnorm(conv3x3(x, w1_ref), g1_ref, b1_ref), 0.0)
    h = h * mask                       # zero pad rows -> implicit height padding for conv2
    o = batchnorm(conv3x3(h, w2_ref), g2_ref, b2_ref)
    out_ref[...] = jnp.maximum(o + x, 0.0)   # identity residual (Cin == Cout) + relu


def basic_block(x_nchw, w1, g1, b1, w2, g2, b2):
    """x: (N, Cin, H, W) f32. w*: (Cout, Cin, 3, 3) PyTorch OIHW. Returns (N, Cout, H, W)."""
    N, Cin, H, W = x_nchw.shape
    Cout = w1.shape[0]
    assert Cin == Cout, "identity residual requires in_channels == out_channels (stride=1)"
    Hp = H + 2
    R = N * Hp
    R_pad = ((R + 7) // 8) * 8            # sublane-aligned row count -> unmasked vreg access
    WCin, WCout = W * Cin, W * Cout

    # NCHW -> NHWC, zero-pad HEIGHT only, pack (width, channel) onto the lane axis,
    # pad the row count up to a multiple of 8 with zero rows.
    x_nhwc = jnp.transpose(x_nchw, (0, 2, 3, 1)).astype(jnp.float32)
    x_rows = jnp.pad(x_nhwc, ((0, 0), (1, 1), (0, 0), (0, 0))).reshape(R, WCin)
    x_rows = jnp.pad(x_rows, ((0, R_pad - R), (0, 0)))

    # Interior-row mask (drops height-pad rows and alignment-tail rows from BN stats).
    r_idx = jnp.arange(R_pad, dtype=jnp.int32)
    y_pad = r_idx % Hp
    interior = (r_idx < R) & (y_pad >= 1) & (y_pad <= H)
    row_mask = interior.astype(jnp.float32).reshape(R_pad, 1)

    # Block-banded weights: band[(xi, ci), (xo, co)] = w[co, ci, ky, xi-xo+1] if |xi-xo|<=1.
    # Width zero-padding is implicit (out-of-band entries are simply zero).
    def banded(w_oihw, cin):
        wk = jnp.transpose(w_oihw, (2, 3, 1, 0)).astype(jnp.float32)   # (3, 3, cin, Cout)
        xi = jnp.arange(W)[:, None]
        xo = jnp.arange(W)[None, :]
        kx = xi - xo + 1
        valid = ((kx >= 0) & (kx <= 2)).astype(jnp.float32)[:, :, None, None]
        kx_c = jnp.clip(kx, 0, 2)
        bands = []
        for ky in range(3):
            g = wk[ky][kx_c] * valid                                   # (W, W, cin, Cout)
            bands.append(jnp.transpose(g, (0, 2, 1, 3)).reshape(W * cin, WCout))
        return jnp.concatenate(bands, axis=0)                          # (3*W*cin, W*Cout)

    w1_band = banded(w1, Cin)
    w2_band = banded(w2, Cout)

    # BN affine params broadcast onto the packed (x, co) lanes: lane x*Cout+co holds v[co].
    def to_lanes(v):
        return jnp.tile(v.astype(jnp.float32).reshape(1, Cout), (1, W))

    # Channel-pooling matrix: pool[i, j] = 1/(N*H*W) iff lanes i and j hold the same channel.
    lane = jnp.arange(WCout)
    pool = ((lane[:, None] % Cout) == (lane[None, :] % Cout)).astype(jnp.float32)
    pool = pool / float(N * H * W)

    out_rows = pl.pallas_call(
        basic_block_kernel,
        out_shape=jax.ShapeDtypeStruct((R_pad, WCout), jnp.float32),
        in_specs=[pl.BlockSpec(memory_space=pltpu.MemorySpace.VMEM)] * 9,
        out_specs=pl.BlockSpec(memory_space=pltpu.MemorySpace.VMEM),
    )(x_rows, row_mask,
      w1_band, to_lanes(g1), to_lanes(b1),
      w2_band, to_lanes(g2), to_lanes(b2), pool)

    # Drop the height-pad / alignment rows and return NCHW.
    out = out_rows[:R].reshape(N, Hp, W, Cout)[:, 1:H + 1]
    return jnp.transpose(out, (0, 3, 1, 2))


def reference(x, w1, g1, b1, w2, g2, b2):
    """Pure-JAX reference matching the PyTorch BasicBlock forward (train-mode BN)."""
    def conv(a, w):
        return lax.conv_general_dilated(
            a, w, window_strides=(1, 1), padding=((1, 1), (1, 1)),
            dimension_numbers=("NCHW", "OIHW", "NCHW"))

    def bn(a, g, b):
        mu = jnp.mean(a, axis=(0, 2, 3), keepdims=True)
        var = jnp.mean((a - mu) ** 2, axis=(0, 2, 3), keepdims=True)
        return (a - mu) * lax.rsqrt(var + EPS) * g.reshape(1, -1, 1, 1) + b.reshape(1, -1, 1, 1)

    out = jax.nn.relu(bn(conv(x, w1), g1, b1))
    out = bn(conv(out, w2), g2, b2)
    return jax.nn.relu(out + x)


if __name__ == "__main__":
    # in_channels == out_channels, stride=1, downsample=None; W*C = 128 -> lane-perfect.
    N, C, H, W = 2, 8, 16, 16
    key = jax.random.PRNGKey(0)
    k_x, k_w1, k_w2, k_g1, k_b1, k_g2, k_b2 = jax.random.split(key, 7)

    x = jax.random.normal(k_x, (N, C, H, W), jnp.float32)
    w1 = jax.random.normal(k_w1, (C, C, 3, 3), jnp.float32) * 0.1
    w2 = jax.random.normal(k_w2, (C, C, 3, 3), jnp.float32) * 0.1
    g1 = 1.0 + 0.1 * jax.random.normal(k_g1, (C,), jnp.float32)
    b1 = 0.1 * jax.random.normal(k_b1, (C,), jnp.float32)
    g2 = 1.0 + 0.1 * jax.random.normal(k_g2, (C,), jnp.float32)
    b2 = 0.1 * jax.random.normal(k_b2, (C,), jnp.float32)

    out = jax.block_until_ready(basic_block(x, w1, g1, b1, w2, g2, b2))
    ref = jax.block_until_ready(reference(x, w1, g1, b1, w2, g2, b2))
    assert out.shape == (N, C, H, W)
    np.testing.assert_allclose(np.asarray(out), np.asarray(ref), atol=2e-4, rtol=2e-4)

    print("KERNEL_OK")
</pallas_src>

<mosaic_0001>
module attributes {stable_mosaic.version = 11 : i64} {
  func.func @basic_block_kernel(%arg0: memref<40x128xf32, #tpu.memory_space<vmem>>, %arg1: memref<40x1xf32, #tpu.memory_space<vmem>>, %arg2: memref<384x128xf32, #tpu.memory_space<vmem>>, %arg3: memref<1x128xf32, #tpu.memory_space<vmem>>, %arg4: memref<1x128xf32, #tpu.memory_space<vmem>>, %arg5: memref<384x128xf32, #tpu.memory_space<vmem>>, %arg6: memref<1x128xf32, #tpu.memory_space<vmem>>, %arg7: memref<1x128xf32, #tpu.memory_space<vmem>>, %arg8: memref<128x128xf32, #tpu.memory_space<vmem>>, %arg9: memref<40x128xf32, #tpu.memory_space<vmem>>) attributes {dimension_semantics = [], scalar_prefetch = 0 : i64, scratch_operands = 0 : i64, tpu.core_type = #tpu.core_type<tc>} {
    %c0 = arith.constant 0 : index
    %c0_0 = arith.constant 0 : index
    %0 = vector.load %arg0[%c0, %c0_0] : memref<40x128xf32, #tpu.memory_space<vmem>>, vector<40x128xf32>
    %c0_1 = arith.constant 0 : index
    %c0_2 = arith.constant 0 : index
    %1 = vector.load %arg1[%c0_1, %c0_2] : memref<40x1xf32, #tpu.memory_space<vmem>>, vector<40x1xf32>
    %c0_3 = arith.constant 0 : index
    %c0_4 = arith.constant 0 : index
    %2 = vector.load %arg8[%c0_3, %c0_4] : memref<128x128xf32, #tpu.memory_space<vmem>>, vector<128x128xf32>
    %c1_i32 = arith.constant 1 : i32
    %3 = tpu.dynamic_rotate %0 by %c1_i32 dim 0 : vector<40x128xf32>, i32 -> vector<40x128xf32>
    %c39_i32 = arith.constant 39 : i32
    %4 = tpu.dynamic_rotate %0 by %c39_i32 dim 0 : vector<40x128xf32>, i32 -> vector<40x128xf32>
    %5 = tpu.concatenate %3, %0, %4 in 1 : vector<40x128xf32>, vector<40x128xf32>, vector<40x128xf32> -> vector<40x384xf32>
    %c0_5 = arith.constant 0 : index
    %c0_6 = arith.constant 0 : index
    %6 = vector.load %arg2[%c0_5, %c0_6] : memref<384x128xf32, #tpu.memory_space<vmem>>, vector<384x128xf32>
    %cst = arith.constant dense<0.000000e+00> : vector<40x128xf32>
    %7 = tpu.matmul %5, %6, %cst {dimension_numbers = #tpu.dot_dimension_numbers<[1], [0], [0], [1], [0, 0, 1, 1], [], []>} : vector<40x384xf32>, vector<384x128xf32>, vector<40x128xf32> -> vector<40x128xf32>
    %8 = vector.broadcast %1 : vector<40x1xf32> to vector<40x128xf32>
    %9 = arith.mulf %7, %8 : vector<40x128xf32>
    %cst_7 = arith.constant dense<0.000000e+00> : vector<128xf32>
    %10 = vector.multi_reduction <add>, %9, %cst_7 [0] : vector<40x128xf32> to vector<128xf32>
    %11 = vector.shape_cast %10 : vector<128xf32> to vector<1x128xf32>
    %cst_8 = arith.constant dense<0.000000e+00> : vector<1x128xf32>
    %12 = tpu.matmul %11, %2, %cst_8 {dimension_numbers = #tpu.dot_dimension_numbers<[1], [0], [0], [1], [0, 0, 1, 1], [], []>} : vector<1x128xf32>, vector<128x128xf32>, vector<1x128xf32> -> vector<1x128xf32>
    %13 = arith.mulf %9, %9 : vector<40x128xf32>
    %cst_9 = arith.constant dense<0.000000e+00> : vector<128xf32>
    %14 = vector.multi_reduction <add>, %13, %cst_9 [0] : vector<40x128xf32> to vector<128xf32>
    %15 = vector.shape_cast %14 : vector<128xf32> to vector<1x128xf32>
    %cst_10 = arith.constant dense<0.000000e+00> : vector<1x128xf32>
    %16 = tpu.matmul %15, %2, %cst_10 {dimension_numbers = #tpu.dot_dimension_numbers<[1], [0], [0], [1], [0, 0, 1, 1], [], []>} : vector<1x128xf32>, vector<128x128xf32>, vector<1x128xf32> -> vector<1x128xf32>
    %17 = arith.mulf %12, %12 : vector<1x128xf32>
    %18 = arith.subf %16, %17 : vector<1x128xf32>
    %c0_11 = arith.constant 0 : index
    %c0_12 = arith.constant 0 : index
    %19 = vector.load %arg3[%c0_11, %c0_12] : memref<1x128xf32, #tpu.memory_space<vmem>>, vector<1x128xf32>
    %cst_13 = arith.constant 9.99999974E-6 : f32
    %20 = vector.broadcast %cst_13 : f32 to vector<1x128xf32>
    %21 = arith.addf %18, %20 : vector<1x128xf32>
    %22 = math.rsqrt %21 : vector<1x128xf32>
    %23 = arith.mulf %19, %22 : vector<1x128xf32>
    %c0_14 = arith.constant 0 : index
    %c0_15 = arith.constant 0 : index
    %24 = vector.load %arg4[%c0_14, %c0_15] : memref<1x128xf32, #tpu.memory_space<vmem>>, vector<1x128xf32>
    %25 = arith.mulf %12, %23 : vector<1x128xf32>
    %26 = arith.subf %24, %25 : vector<1x128xf32>
    %27 = vector.broadcast %23 : vector<1x128xf32> to vector<40x128xf32>
    %28 = arith.mulf %7, %27 : vector<40x128xf32>
    %29 = vector.broadcast %26 : vector<1x128xf32> to vector<40x128xf32>
    %30 = arith.addf %28, %29 : vector<40x128xf32>
    %cst_16 = arith.constant 0.000000e+00 : f32
    %31 = vector.broadcast %cst_16 : f32 to vector<40x128xf32>
    %32 = arith.maximumf %30, %31 : vector<40x128xf32>
    %33 = vector.broadcast %1 : vector<40x1xf32> to vector<40x128xf32>
    %34 = arith.mulf %32, %33 : vector<40x128xf32>
    %c1_i32_17 = arith.constant 1 : i32
    %35 = tpu.dynamic_rotate %34 by %c1_i32_17 dim 0 : vector<40x128xf32>, i32 -> vector<40x128xf32>
    %c39_i32_18 = arith.constant 39 : i32
    %36 = tpu.dynamic_rotate %34 by %c39_i32_18 dim 0 : vector<40x128xf32>, i32 -> vector<40x128xf32>
    %37 = tpu.concatenate %35, %34, %36 in 1 : vector<40x128xf32>, vector<40x128xf32>, vector<40x128xf32> -> vector<40x384xf32>
    %c0_19 = arith.constant 0 : index
    %c0_20 = arith.constant 0 : index
    %38 = vector.load %arg5[%c0_19, %c0_20] : memref<384x128xf32, #tpu.memory_space<vmem>>, vector<384x128xf32>
    %cst_21 = arith.constant dense<0.000000e+00> : vector<40x128xf32>
    %39 = tpu.matmul %37, %38, %cst_21 {dimension_numbers = #tpu.dot_dimension_numbers<[1], [0], [0], [1], [0, 0, 1, 1], [], []>} : vector<40x384xf32>, vector<384x128xf32>, vector<40x128xf32> -> vector<40x128xf32>
    %40 = vector.broadcast %1 : vector<40x1xf32> to vector<40x128xf32>
    %41 = arith.mulf %39, %40 : vector<40x128xf32>
    %cst_22 = arith.constant dense<0.000000e+00> : vector<128xf32>
    %42 = vector.multi_reduction <add>, %41, %cst_22 [0] : vector<40x128xf32> to vector<128xf32>
    %43 = vector.shape_cast %42 : vector<128xf32> to vector<1x128xf32>
    %cst_23 = arith.constant dense<0.000000e+00> : vector<1x128xf32>
    %44 = tpu.matmul %43, %2, %cst_23 {dimension_numbers = #tpu.dot_dimension_numbers<[1], [0], [0], [1], [0, 0, 1, 1], [], []>} : vector<1x128xf32>, vector<128x128xf32>, vector<1x128xf32> -> vector<1x128xf32>
    %45 = arith.mulf %41, %41 : vector<40x128xf32>
    %cst_24 = arith.constant dense<0.000000e+00> : vector<128xf32>
    %46 = vector.multi_reduction <add>, %45, %cst_24 [0] : vector<40x128xf32> to vector<128xf32>
    %47 = vector.shape_cast %46 : vector<128xf32> to vector<1x128xf32>
    %cst_25 = arith.constant dense<0.000000e+00> : vector<1x128xf32>
    %48 = tpu.matmul %47, %2, %cst_25 {dimension_numbers = #tpu.dot_dimension_numbers<[1], [0], [0], [1], [0, 0, 1, 1], [], []>} : vector<1x128xf32>, vector<128x128xf32>, vector<1x128xf32> -> vector<1x128xf32>
    %49 = arith.mulf %44, %44 : vector<1x128xf32>
    %50 = arith.subf %48, %49 : vector<1x128xf32>
    %c0_26 = arith.constant 0 : index
    %c0_27 = arith.constant 0 : index
    %51 = vector.load %arg6[%c0_26, %c0_27] : memref<1x128xf32, #tpu.memory_space<vmem>>, vector<1x128xf32>
    %cst_28 = arith.constant 9.99999974E-6 : f32
    %52 = vector.broadcast %cst_28 : f32 to vector<1x128xf32>
    %53 = arith.addf %50, %52 : vector<1x128xf32>
    %54 = math.rsqrt %53 : vector<1x128xf32>
    %55 = arith.mulf %51, %54 : vector<1x128xf32>
    %c0_29 = arith.constant 0 : index
    %c0_30 = arith.constant 0 : index
    %56 = vector.load %arg7[%c0_29, %c0_30] : memref<1x128xf32, #tpu.memory_space<vmem>>, vector<1x128xf32>
    %57 = arith.mulf %44, %55 : vector<1x128xf32>
    %58 = arith.subf %56, %57 : vector<1x128xf32>
    %59 = vector.broadcast %55 : vector<1x128xf32> to vector<40x128xf32>
    %60 = arith.mulf %39, %59 : vector<40x128xf32>
    %61 = vector.broadcast %58 : vector<1x128xf32> to vector<40x128xf32>
    %62 = arith.addf %60, %61 : vector<40x128xf32>
    %63 = arith.addf %62, %0 : vector<40x128xf32>
    %cst_31 = arith.constant 0.000000e+00 : f32
    %64 = vector.broadcast %cst_31 : f32 to vector<40x128xf32>
    %65 = arith.maximumf %63, %64 : vector<40x128xf32>
    %c0_32 = arith.constant 0 : index
    %c0_33 = arith.constant 0 : index
    %66 = vector.load %arg9[%c0_32, %c0_33] : memref<40x128xf32, #tpu.memory_space<vmem>>, vector<40x128xf32>
    tpu.vector_store %arg9[%c0_32, %c0_33], %65 {strides = array<i32>} : memref<40x128xf32, #tpu.memory_space<vmem>>, vector<40x128xf32>,
    return
  }
}

</mosaic_0001>

<llo_original>
// kernel: tpu_custom_call.1
$region0: #{tpu_custom_call.1}
  #allocation0 [shape = 'u32[]', space=smem, size = 0x4, offset = 0x4, fixed_abs, tag = 'smem constant byte address 0x4 - core index']
  #allocation1 [shape = 'u32[144,128]{1,0:T(1,128)}', space=vmem, size = 0x12000, scoped, tag = 'internal scratch']
  %s0 = inlined_call_operand.vmem [shape: f32[40,128], index: 0, kind: input, shape index: {}]
  %s1 = inlined_call_operand.vmem [shape: f32[40,1], index: 1, kind: input, shape index: {}]
  %s2 = inlined_call_operand.hbm [shape: f32[384,128], index: 2, kind: input, shape index: {}]
  %s3 = inlined_call_operand.vmem [shape: f32[1,128], index: 3, kind: input, shape index: {}]
  %s4 = inlined_call_operand.vmem [shape: f32[1,128], index: 4, kind: input, shape index: {}]
  %s5 = inlined_call_operand.hbm [shape: f32[384,128], index: 5, kind: input, shape index: {}]
  %s6 = inlined_call_operand.vmem [shape: f32[1,128], index: 6, kind: input, shape index: {}]
  %s7 = inlined_call_operand.vmem [shape: f32[1,128], index: 7, kind: input, shape index: {}]
  %s8 = inlined_call_operand.hbm [shape: f32[128,128], index: 8, kind: input, shape index: {}]
  %s9 = inlined_call_operand.hbm [shape: f32[40,128], index: 9, kind: output, shape index: {}]
  %s10 = sld [smem:[#allocation0]]
  $region58: #{tpu_custom_call.1} parent=0
    _
  %s12 = ssub.s32 1, %s10
  %s13 = scalar_select 0, %s12, %s10
  $region1: #{tpu_custom_call.1} parent=0
    #allocation2 [shape = 'u8[196608]{0}', space=vmem, size = 0x30000, scoped, tag = 'input window, operand 2, single buffered']
    #allocation3 [shape = 's32[1]{0}', space=sflag, size = 0x4, scoped, tag = 'scoped memory for tpu_custom_call.1']
    #allocation4 [shape = 's32[1]{0}', space=sflag, size = 0x4, scoped, tag = 'scoped memory for tpu_custom_call.1']
    #allocation5 [shape = 'u8[196608]{0}', space=vmem, size = 0x30000, scoped, tag = 'input window, operand 5, single buffered']
    #allocation6 [shape = 's32[1]{0}', space=sflag, size = 0x4, scoped, tag = 'scoped memory for tpu_custom_call.1']
    #allocation7 [shape = 'u8[65536]{0}', space=vmem, size = 0x10000, scoped, tag = 'input window, operand 8, single buffered']
    #allocation8 [shape = 'u8[20480]{0}', space=vmem, size = 0x5000, scoped, tag = 'output window, operand 0, single buffered']
    %14 = vsyncpa [#allocation3], 0
    %15 = vsyncpa [#allocation6], 0
    %16 = vsyncpa [#allocation4], 0
    // Predicated region
    $region2: #{tpu_custom_call.1} parent=1 // pred_check
      _
    $region3: #{tpu_custom_call.1} parent=1 // pred_check_branch
      %18 = sbr.rel (0) target = $region5
    $region4: #{tpu_custom_call.1} parent=1 // pred_region
      _
    $region5: #{tpu_custom_call.1} parent=1 // pred_fallthru
      _
    // Predicated region
    $region6: #{tpu_custom_call.1} parent=1 // pred_check
      _
    $region7: #{tpu_custom_call.1} parent=1 // pred_check_branch
      %20 = sbr.rel (0) target = $region9
    $region8: #{tpu_custom_call.1} parent=1 // pred_region
      _
    $region9: #{tpu_custom_call.1} parent=1 // pred_fallthru
      _
    // Predicated region
    $region10: #{tpu_custom_call.1} parent=1 // pred_check
      _
    $region11: #{tpu_custom_call.1} parent=1 // pred_check_branch
      %22 = sbr.rel (0) target = $region13
    $region12: #{tpu_custom_call.1} parent=1 // pred_region
      %s24 = ssub.s32 6144, 6144
      %25 = vsyncadd [#allocation3], %s24
      %s26 = sshll.u32 [#allocation2], 4
      %s27 = int_to_ptr.vmem [resolvable:$true] %s26
      %32 = dma.hbm_to_vmem [thread:$0]  %s2, 6144, %s27, [#allocation3], 128, 128, 8
    $region13: #{tpu_custom_call.1} parent=1 // pred_fallthru
      _
    // Predicated region
    $region14: #{tpu_custom_call.1} parent=1 // pred_check
      _
    $region15: #{tpu_custom_call.1} parent=1 // pred_check_branch
      %34 = sbr.rel (0) target = $region17
    $region16: #{tpu_custom_call.1} parent=1 // pred_region
      _
    $region17: #{tpu_custom_call.1} parent=1 // pred_fallthru
      _
    // Predicated region
    $region18: #{tpu_custom_call.1} parent=1 // pred_check
      _
    $region19: #{tpu_custom_call.1} parent=1 // pred_check_branch
      %36 = sbr.rel (0) target = $region21
    $region20: #{tpu_custom_call.1} parent=1 // pred_region
      _
    $region21: #{tpu_custom_call.1} parent=1 // pred_fallthru
      _
    // Predicated region
    $region22: #{tpu_custom_call.1} parent=1 // pred_check
      _
    $region23: #{tpu_custom_call.1} parent=1 // pred_check_branch
      %38 = sbr.rel (0) target = $region25
    $region24: #{tpu_custom_call.1} parent=1 // pred_region
      %s40 = ssub.s32 6144, 6144
      %41 = vsyncadd [#allocation6], %s40
      %s42 = sshll.u32 [#allocation5], 4
      %s43 = int_to_ptr.vmem [resolvable:$true] %s42
      %48 = dma.hbm_to_vmem [thread:$0]  %s5, 6144, %s43, [#allocation6], 128, 128, 8
    $region25: #{tpu_custom_call.1} parent=1 // pred_fallthru
      _
    // Predicated region
    $region26: #{tpu_custom_call.1} parent=1 // pred_check
      _
    $region27: #{tpu_custom_call.1} parent=1 // pred_check_branch
      %50 = sbr.rel (0) target = $region29
    $region28: #{tpu_custom_call.1} parent=1 // pred_region
      _
    $region29: #{tpu_custom_call.1} parent=1 // pred_fallthru
      _
    // Predicated region
    $region30: #{tpu_custom_call.1} parent=1 // pred_check
      _
    $region31: #{tpu_custom_call.1} parent=1 // pred_check_branch
      %52 = sbr.rel (0) target = $region33
    $region32: #{tpu_custom_call.1} parent=1 // pred_region
      _
    $region33: #{tpu_custom_call.1} parent=1 // pred_fallthru
      _
    // Predicated region
    $region34: #{tpu_custom_call.1} parent=1 // pred_check
      _
    $region35: #{tpu_custom_call.1} parent=1 // pred_check_branch
      %54 = sbr.rel (0) target = $region37
    $region36: #{tpu_custom_call.1} parent=1 // pred_region
      %s56 = ssub.s32 2048, 2048
      %57 = vsyncadd [#allocation6], %s56
      %s58 = sshll.u32 [#allocation7], 4
      %s59 = int_to_ptr.vmem [resolvable:$true] %s58
      %64 = dma.hbm_to_vmem [thread:$0]  %s8, 2048, %s59, [#allocation6], 128, 128, 8
    $region37: #{tpu_custom_call.1} parent=1 // pred_fallthru
      _
    // Predicated region
    $region38: #{tpu_custom_call.1} parent=1 // pred_check
      _
    $region39: #{tpu_custom_call.1} parent=1 // pred_check_branch
      %66 = sbr.rel (0) target = $region41
    $region40: #{tpu_custom_call.1} parent=1 // pred_region
      %67 = dma.done [#allocation3], 6144
    $region41: #{tpu_custom_call.1} parent=1 // pred_fallthru
      _
    // Predicated region
    $region42: #{tpu_custom_call.1} parent=1 // pred_check
      _
    $region43: #{tpu_custom_call.1} parent=1 // pred_check_branch
      %69 = sbr.rel (0) target = $region45
    $region44: #{tpu_custom_call.1} parent=1 // pred_region
      %70 = dma.done [#allocation6], 6144
    $region45: #{tpu_custom_call.1} parent=1 // pred_fallthru
      _
    // Predicated region
    $region46: #{tpu_custom_call.1} parent=1 // pred_check
      _
    $region47: #{tpu_custom_call.1} parent=1 // pred_check_branch
      %72 = sbr.rel (0) target = $region49
    $region48: #{tpu_custom_call.1} parent=1 // pred_region
      %73 = dma.done [#allocation6], 2048
    $region49: #{tpu_custom_call.1} parent=1 // pred_fallthru
      _
    %v74 = vld [vmem:[%s0] sm:$0xff]
    %v75 = vld [vmem:[%s0 + $0x8] sm:$0xff]
    %v76 = vld [vmem:[%s0 + $0x10] sm:$0xff]
    %v77 = vld [vmem:[%s0 + $0x18] sm:$0xff]
    %v78 = vld [vmem:[%s0 + $0x20] sm:$0xff]
    %v79 = vld [vmem:[%s1] sm:$0xff]
    %v80 = vld [vmem:[%s1 + $0x8] sm:$0xff]
    %v81 = vld [vmem:[%s1 + $0x10] sm:$0xff]
    %v82 = vld [vmem:[%s1 + $0x18] sm:$0xff]
    %v83 = vld [vmem:[%s1 + $0x20] sm:$0xff]
    %v84 = vld [vmem:[#allocation7] sm:$0xff]
    %v85 = vld [vmem:[#allocation7 + $0x8] sm:$0xff]
    %v86 = vld [vmem:[#allocation7 + $0x10] sm:$0xff]
    %v87 = vld [vmem:[#allocation7 + $0x18] sm:$0xff]
    %v88 = vld [vmem:[#allocation7 + $0x20] sm:$0xff]
    %v89 = vld [vmem:[#allocation7 + $0x28] sm:$0xff]
    %v90 = vld [vmem:[#allocation7 + $0x30] sm:$0xff]
    %v91 = vld [vmem:[#allocation7 + $0x38] sm:$0xff]
    %v92 = vld [vmem:[#allocation7 + $0x40] sm:$0xff]
    %v93 = vld [vmem:[#allocation7 + $0x48] sm:$0xff]
    %v94 = vld [vmem:[#allocation7 + $0x50] sm:$0xff]
    %v95 = vld [vmem:[#allocation7 + $0x58] sm:$0xff]
    %v96 = vld [vmem:[#allocation7 + $0x60] sm:$0xff]
    %v97 = vld [vmem:[#allocation7 + $0x68] sm:$0xff]
    %v98 = vld [vmem:[#allocation7 + $0x70] sm:$0xff]
    %v99 = vld [vmem:[#allocation7 + $0x78] sm:$0xff]
    %v100 = vrot.slane %v74, 7
    %v101 = vrot.slane %v75, 7
    %v102 = vrot.slane %v76, 7
    %v103 = vrot.slane %v77, 7
    %v104 = vrot.slane %v78, 7
    %v105 = vlaneseq
    %v106 = vshrl.u32 %v105, 7
    %vm107 = vcmp.lt.s32.totalorder %v106, 1
    %v108 = vsel %vm107, %v103, %v104
    %v109 = vsel %vm107, %v102, %v103
    %v110 = vsel %vm107, %v101, %v102
    %v111 = vsel %vm107, %v100, %v101
    %v112 = vsel %vm107, %v104, %v100
    %v113 = vrot.slane %v74, 1
    %v114 = vrot.slane %v75, 1
    %v115 = vrot.slane %v76, 1
    %v116 = vrot.slane %v77, 1
    %v117 = vrot.slane %v78, 1
    %vm118 = vcmp.lt.s32.totalorder %v106, 7
    %v119 = vsel %vm118, %v116, %v117
    %v120 = vsel %vm118, %v115, %v116
    %v121 = vsel %vm118, %v114, %v115
    %v122 = vsel %vm118, %v113, %v114
    %v123 = vsel %vm118, %v117, %v113
    %v124 = vld [vmem:[#allocation2] sm:$0xff]
    %v125 = vld [vmem:[#allocation2 + $0x8] sm:$0xff]
    %v126 = vld [vmem:[#allocation2 + $0x10] sm:$0xff]
    %v127 = vld [vmem:[#allocation2 + $0x18] sm:$0xff]
    %v128 = vld [vmem:[#allocation2 + $0x20] sm:$0xff]
    %v129 = vld [vmem:[#allocation2 + $0x28] sm:$0xff]
    %v130 = vld [vmem:[#allocation2 + $0x30] sm:$0xff]
    %v131 = vld [vmem:[#allocation2 + $0x38] sm:$0xff]
    %v132 = vld [vmem:[#allocation2 + $0x40] sm:$0xff]
    %v133 = vld [vmem:[#allocation2 + $0x48] sm:$0xff]
    %v134 = vld [vmem:[#allocation2 + $0x50] sm:$0xff]
    %v135 = vld [vmem:[#allocation2 + $0x58] sm:$0xff]
    %v136 = vld [vmem:[#allocation2 + $0x60] sm:$0xff]
    %v137 = vld [vmem:[#allocation2 + $0x68] sm:$0xff]
    %v138 = vld [vmem:[#allocation2 + $0x70] sm:$0xff]
    %v139 = vld [vmem:[#allocation2 + $0x78] sm:$0xff]
    %v140 = vld [vmem:[#allocation2 + $0x80] sm:$0xff]
    %v141 = vld [vmem:[#allocation2 + $0x88] sm:$0xff]
    %v142 = vld [vmem:[#allocation2 + $0x90] sm:$0xff]
    %v143 = vld [vmem:[#allocation2 + $0x98] sm:$0xff]
    %v144 = vld [vmem:[#allocation2 + $0xa0] sm:$0xff]
    %v145 = vld [vmem:[#allocation2 + $0xa8] sm:$0xff]
    %v146 = vld [vmem:[#allocation2 + $0xb0] sm:$0xff]
    %v147 = vld [vmem:[#allocation2 + $0xb8] sm:$0xff]
    %v148 = vld [vmem:[#allocation2 + $0xc0] sm:$0xff]
    %v149 = vld [vmem:[#allocation2 + $0xc8] sm:$0xff]
    %v150 = vld [vmem:[#allocation2 + $0xd0] sm:$0xff]
    %v151 = vld [vmem:[#allocation2 + $0xd8] sm:$0xff]
    %v152 = vld [vmem:[#allocation2 + $0xe0] sm:$0xff]
    %v153 = vld [vmem:[#allocation2 + $0xe8] sm:$0xff]
    %v154 = vld [vmem:[#allocation2 + $0xf0] sm:$0xff]
    %v155 = vld [vmem:[#allocation2 + $0xf8] sm:$0xff]
    %v156 = vld [vmem:[#allocation2 + $0x100] sm:$0xff]
    %v157 = vld [vmem:[#allocation2 + $0x108] sm:$0xff]
    %v158 = vld [vmem:[#allocation2 + $0x110] sm:$0xff]
    %v159 = vld [vmem:[#allocation2 + $0x118] sm:$0xff]
    %v160 = vld [vmem:[#allocation2 + $0x120] sm:$0xff]
    %v161 = vld [vmem:[#allocation2 + $0x128] sm:$0xff]
    %v162 = vld [vmem:[#allocation2 + $0x130] sm:$0xff]
    %v163 = vld [vmem:[#allocation2 + $0x138] sm:$0xff]
    %v164 = vld [vmem:[#allocation2 + $0x140] sm:$0xff]
    %v165 = vld [vmem:[#allocation2 + $0x148] sm:$0xff]
    %v166 = vld [vmem:[#allocation2 + $0x150] sm:$0xff]
    %v167 = vld [vmem:[#allocation2 + $0x158] sm:$0xff]
    %v168 = vld [vmem:[#allocation2 + $0x160] sm:$0xff]
    %v169 = vld [vmem:[#allocation2 + $0x168] sm:$0xff]
    %v170 = vld [vmem:[#allocation2 + $0x170] sm:$0xff]
    %v171 = vld [vmem:[#allocation2 + $0x178] sm:$0xff]
    %172 = vmatprep.subr.mxu0 0.0
    %173 = vmatpush1.msra.mxu0 %v124
    %174 = vmatprep.subr.mxu0 0.0
    %175 = vmatpush1.msra.mxu0 %v125
    %176 = vmatprep.subr.mxu0 0.0
    %177 = vmatpush1.msra.mxu0 %v126
    %178 = vmatprep.subr.mxu0 0.0
    %179 = vmatpush1.msra.mxu0 %v127
    %180 = vmatprep.subr.mxu0 0.0
    %181 = vmatpush1.msra.mxu0 %v128
    %182 = vmatprep.subr.mxu0 0.0
    %183 = vmatpush1.msra.mxu0 %v129
    %184 = vmatprep.subr.mxu0 0.0
    %185 = vmatpush1.msra.mxu0 %v130
    %186 = vmatprep.subr.mxu0 0.0
    %187 = vmatpush1.msra.mxu0 %v131
    %188 = vmatprep.subr.mxu0 0.0
    %189 = vmatpush1.msra.mxu0 %v132
    %190 = vmatprep.subr.mxu0 0.0
    %191 = vmatpush1.msra.mxu0 %v133
    %192 = vmatprep.subr.mxu0 0.0
    %193 = vmatpush1.msra.mxu0 %v134
    %194 = vmatprep.subr.mxu0 0.0
    %195 = vmatpush1.msra.mxu0 %v135
    %196 = vmatprep.subr.mxu0 0.0
    %197 = vmatpush1.msra.mxu0 %v136
    %198 = vmatprep.subr.mxu0 0.0
    %199 = vmatpush1.msra.mxu0 %v137
    %200 = vmatprep.subr.mxu0 0.0
    %201 = vmatpush1.msra.mxu0 %v138
    %202 = vmatprep.subr.mxu0 0.0
    %203 = vmatpush1.msra.mxu0 %v139
    %204 = vmatprep.subr.mxu0 0.0
    %205 = vmatpush1.msra.mxu0 %v140
    %206 = vmatprep.subr.mxu0 0.0
    %207 = vmatpush1.msra.mxu0 %v141
    %208 = vmatprep.subr.mxu0 0.0
    %209 = vmatpush1.msra.mxu0 %v142
    %210 = vmatprep.subr.mxu0 0.0
    %211 = vmatpush1.msra.mxu0 %v143
    %212 = vmatprep.subr.mxu0 0.0
    %213 = vmatpush1.msra.mxu0 %v144
    %214 = vmatprep.subr.mxu0 0.0
    %215 = vmatpush1.msra.mxu0 %v145
    %216 = vmatprep.subr.mxu0 0.0
    %217 = vmatpush1.msra.mxu0 %v146
    %218 = vmatprep.subr.mxu0 0.0
    %219 = vmatpush1.msra.mxu0 %v147
    %220 = vmatprep.subr.mxu0 0.0
    %221 = vmatpush1.msra.mxu0 %v148
    %222 = vmatprep.subr.mxu0 0.0
    %223 = vmatpush1.msra.mxu0 %v149
    %224 = vmatprep.subr.mxu0 0.0
    %225 = vmatpush1.msra.mxu0 %v150
    %226 = vmatprep.subr.mxu0 0.0
    %227 = vmatpush1.msra.mxu0 %v151
    %228 = vmatprep.subr.mxu0 0.0
    %229 = vmatpush1.msra.mxu0 %v152
    %230 = vmatprep.subr.mxu0 0.0
    %231 = vmatpush1.msra.mxu0 %v153
    %232 = vmatprep.subr.mxu0 0.0
    %233 = vmatpush1.msra.mxu0 %v154
    %234 = vmatprep.subr.mxu0 0.0
    %235 = vmatpush1.msra.mxu0 %v155
    %236 = vmatprep.mubr.f32.mxu0 %v74
    %237 = vmatmul.mubr.f32.gmra.mrb[0].mxu0 %v112
    %v238 = vpop.f32.mrb[0].mxu0
    %v239 = vadd.f32 0.0, %v238
    %v240 = vpop.f32.mrb[0].mxu0
    %241 = vmatprep.mubr.f32.mxu0 %v75
    %242 = vmatmul.mubr.f32.gmra.mrb[0].mxu0 %v111
    %v243 = vpop.f32.mrb[0].mxu0
    %v244 = vadd.f32 0.0, %v243
    %v245 = vpop.f32.mrb[0].mxu0
    %246 = vmatprep.mubr.f32.mxu0 %v76
    %247 = vmatmul.mubr.f32.gmra.mrb[0].mxu0 %v110
    %v248 = vpop.f32.mrb[0].mxu0
    %v249 = vadd.f32 0.0, %v248
    %v250 = vpop.f32.mrb[0].mxu0
    %251 = vmatprep.mubr.f32.mxu0 %v77
    %252 = vmatmul.mubr.f32.gmra.mrb[0].mxu0 %v109
    %v253 = vpop.f32.mrb[0].mxu0
    %v254 = vadd.f32 0.0, %v253
    %v255 = vpop.f32.mrb[0].mxu0
    %256 = vmatprep.mubr.f32.mxu0 %v78
    %257 = vmatmul.mubr.f32.gmra.mrb[0].mxu0 %v108
    %v258 = vpop.f32.mrb[0].mxu0
    %v259 = vadd.f32 0.0, %v258
    %v260 = vpop.f32.mrb[0].mxu0
    %261 = vdwg.mxu0
    %262 = vmatprep.subr.mxu0 0.0
    %263 = vmatpush1.msra.mxu0 %v156
    %264 = vmatprep.subr.mxu0 0.0
    %265 = vmatpush1.msra.mxu0 %v157
    %266 = vmatprep.subr.mxu0 0.0
    %267 = vmatpush1.msra.mxu0 %v158
    %268 = vmatprep.subr.mxu0 0.0
    %269 = vmatpush1.msra.mxu0 %v159
    %270 = vmatprep.subr.mxu0 0.0
    %271 = vmatpush1.msra.mxu0 %v160
    %272 = vmatprep.subr.mxu0 0.0
    %273 = vmatpush1.msra.mxu0 %v161
    %274 = vmatprep.subr.mxu0 0.0
    %275 = vmatpush1.msra.mxu0 %v162
    %276 = vmatprep.subr.mxu0 0.0
    %277 = vmatpush1.msra.mxu0 %v163
    %278 = vmatprep.subr.mxu0 0.0
    %279 = vmatpush1.msra.mxu0 %v164
    %280 = vmatprep.subr.mxu0 0.0
    %281 = vmatpush1.msra.mxu0 %v165
    %282 = vmatprep.subr.mxu0 0.0
    %283 = vmatpush1.msra.mxu0 %v166
    %284 = vmatprep.subr.mxu0 0.0
    %285 = vmatpush1.msra.mxu0 %v167
    %286 = vmatprep.subr.mxu0 0.0
    %287 = vmatpush1.msra.mxu0 %v168
    %288 = vmatprep.subr.mxu0 0.0
    %289 = vmatpush1.msra.mxu0 %v169
    %290 = vmatprep.subr.mxu0 0.0
    %291 = vmatpush1.msra.mxu0 %v170
    %292 = vmatprep.subr.mxu0 0.0
    %293 = vmatpush1.msra.mxu0 %v171
    %294 = vmatprep.subr.mxu0 0.0
    %295 = vmatpush1.msra.mxu0 0.0
    %296 = vmatprep.subr.mxu0 0.0
    %297 = vmatpush1.msra.mxu0 0.0
    %298 = vmatprep.subr.mxu0 0.0
    %299 = vmatpush1.msra.mxu0 0.0
    %300 = vmatprep.subr.mxu0 0.0
    %301 = vmatpush1.msra.mxu0 0.0
    %302 = vmatprep.subr.mxu0 0.0
    %303 = vmatpush1.msra.mxu0 0.0
    %304 = vmatprep.subr.mxu0 0.0
    %305 = vmatpush1.msra.mxu0 0.0
    %306 = vmatprep.subr.mxu0 0.0
    %307 = vmatpush1.msra.mxu0 0.0
    %308 = vmatprep.subr.mxu0 0.0
    %309 = vmatpush1.msra.mxu0 0.0
    %310 = vmatprep.subr.mxu0 0.0
    %311 = vmatpush1.msra.mxu0 0.0
    %312 = vmatprep.subr.mxu0 0.0
    %313 = vmatpush1.msra.mxu0 0.0
    %314 = vmatprep.subr.mxu0 0.0
    %315 = vmatpush1.msra.mxu0 0.0
    %316 = vmatprep.subr.mxu0 0.0
    %317 = vmatpush1.msra.mxu0 0.0
    %318 = vmatprep.subr.mxu0 0.0
    %319 = vmatpush1.msra.mxu0 0.0
    %320 = vmatprep.subr.mxu0 0.0
    %321 = vmatpush1.msra.mxu0 0.0
    %322 = vmatprep.subr.mxu0 0.0
    %323 = vmatpush1.msra.mxu0 0.0
    %324 = vmatprep.subr.mxu0 0.0
    %325 = vmatpush1.msra.mxu0 0.0
    %326 = vmatprep.mubr.f32.mxu0 0.0
    %327 = vmatmul.mubr.f32.gmra.mrb[0].mxu0 %v122
    %v328 = vpop.f32.mrb[0].mxu0
    %v329 = vadd.f32 %v239, %v328
    %v330 = vpop.f32.mrb[0].mxu0
    %331 = vmatprep.mubr.f32.mxu0 0.0
    %332 = vmatmul.mubr.f32.gmra.mrb[0].mxu0 %v121
    %v333 = vpop.f32.mrb[0].mxu0
    %v334 = vadd.f32 %v244, %v333
    %v335 = vpop.f32.mrb[0].mxu0
    %336 = vmatprep.mubr.f32.mxu0 0.0
    %337 = vmatmul.mubr.f32.gmra.mrb[0].mxu0 %v120
    %v338 = vpop.f32.mrb[0].mxu0
    %v339 = vadd.f32 %v249, %v338
    %v340 = vpop.f32.mrb[0].mxu0
    %341 = vmatprep.mubr.f32.mxu0 0.0
    %342 = vmatmul.mubr.f32.gmra.mrb[0].mxu0 %v119
    %v343 = vpop.f32.mrb[0].mxu0
    %v344 = vadd.f32 %v254, %v343
    %v345 = vpop.f32.mrb[0].mxu0
    %346 = vmatprep.mubr.f32.mxu0 0.0
    %347 = vmatmul.mubr.f32.gmra.mrb[0].mxu0 %v123
    %v348 = vpop.f32.mrb[0].mxu0
    %v349 = vadd.f32 %v259, %v348
    %v350 = vpop.f32.mrb[0].mxu0
    %351 = vdwg.mxu0
    %353 = vset.pattern.permute.xlu0 0
    %354 = vperm.xlu0 %353, %v79
    %v355 = vpop.permute.xlu0 %354
    %358 = vset.pattern.permute.xlu0 0
    %359 = vperm.xlu0 %358, %v80
    %v360 = vpop.permute.xlu0 %359
    %363 = vset.pattern.permute.xlu0 0
    %364 = vperm.xlu0 %363, %v81
    %v365 = vpop.permute.xlu0 %364
    %368 = vset.pattern.permute.xlu0 0
    %369 = vperm.xlu0 %368, %v82
    %v370 = vpop.permute.xlu0 %369
    %373 = vset.pattern.permute.xlu0 0
    %374 = vperm.xlu0 %373, %v83
    %v375 = vpop.permute.xlu0 %374
    %v377 = vmul.f32 %v329, %v355
    %v378 = vmul.f32 %v334, %v360
    %v379 = vmul.f32 %v339, %v365
    %v380 = vmul.f32 %v344, %v370
    %v381 = vmul.f32 %v349, %v375
    %v382 = vadd.f32 %v377, %v378
    %v383 = vadd.f32 %v382, %v379
    %v384 = vadd.f32 %v383, %v380
    %v385 = vadd.f32 %v384, %v381
    %v386 = vrot.slane %v385, 4
    %v387 = vadd.f32 %v385, %v386
    %v388 = vrot.slane %v387, 2
    %v389 = vadd.f32 %v387, %v388
    %v390 = vrot.slane %v389, 1
    %v391 = vadd.f32 %v389, %v390
    %392 = vmatprep.subr.mxu0 0.0
    %393 = vmatpush1.msra.mxu0 %v84
    %394 = vmatprep.subr.mxu0 0.0
    %395 = vmatpush1.msra.mxu0 %v85
    %396 = vmatprep.subr.mxu0 0.0
    %397 = vmatpush1.msra.mxu0 %v86
    %398 = vmatprep.subr.mxu0 0.0
    %399 = vmatpush1.msra.mxu0 %v87
    %400 = vmatprep.subr.mxu0 0.0
    %401 = vmatpush1.msra.mxu0 %v88
    %402 = vmatprep.subr.mxu0 0.0
    %403 = vmatpush1.msra.mxu0 %v89
    %404 = vmatprep.subr.mxu0 0.0
    %405 = vmatpush1.msra.mxu0 %v90
    %406 = vmatprep.subr.mxu0 0.0
    %407 = vmatpush1.msra.mxu0 %v91
    %408 = vmatprep.subr.mxu0 0.0
    %409 = vmatpush1.msra.mxu0 %v92
    %410 = vmatprep.subr.mxu0 0.0
    %411 = vmatpush1.msra.mxu0 %v93
    %412 = vmatprep.subr.mxu0 0.0
    %413 = vmatpush1.msra.mxu0 %v94
    %414 = vmatprep.subr.mxu0 0.0
    %415 = vmatpush1.msra.mxu0 %v95
    %416 = vmatprep.subr.mxu0 0.0
    %417 = vmatpush1.msra.mxu0 %v96
    %418 = vmatprep.subr.mxu0 0.0
    %419 = vmatpush1.msra.mxu0 %v97
    %420 = vmatprep.subr.mxu0 0.0
    %421 = vmatpush1.msra.mxu0 %v98
    %422 = vmatprep.subr.mxu0 0.0
    %423 = vmatpush1.msra.mxu0 %v99
    %424 = vmatprep.subr.mxu0 0.0
    %425 = vmatpush1.msra.mxu0 0.0
    %426 = vmatprep.subr.mxu0 0.0
    %427 = vmatpush1.msra.mxu0 0.0
    %428 = vmatprep.subr.mxu0 0.0
    %429 = vmatpush1.msra.mxu0 0.0
    %430 = vmatprep.subr.mxu0 0.0
    %431 = vmatpush1.msra.mxu0 0.0
    %432 = vmatprep.subr.mxu0 0.0
    %433 = vmatpush1.msra.mxu0 0.0
    %434 = vmatprep.subr.mxu0 0.0
    %435 = vmatpush1.msra.mxu0 0.0
    %436 = vmatprep.subr.mxu0 0.0
    %437 = vmatpush1.msra.mxu0 0.0
    %438 = vmatprep.subr.mxu0 0.0
    %439 = vmatpush1.msra.mxu0 0.0
    %440 = vmatprep.subr.mxu0 0.0
    %441 = vmatpush1.msra.mxu0 0.0
    %442 = vmatprep.subr.mxu0 0.0
    %443 = vmatpush1.msra.mxu0 0.0
    %444 = vmatprep.subr.mxu0 0.0
    %445 = vmatpush1.msra.mxu0 0.0
    %446 = vmatprep.subr.mxu0 0.0
    %447 = vmatpush1.msra.mxu0 0.0
    %448 = vmatprep.subr.mxu0 0.0
    %449 = vmatpush1.msra.mxu0 0.0
    %450 = vmatprep.subr.mxu0 0.0
    %451 = vmatpush1.msra.mxu0 0.0
    %452 = vmatprep.subr.mxu0 0.0
    %453 = vmatpush1.msra.mxu0 0.0
    %454 = vmatprep.subr.mxu0 0.0
    %455 = vmatpush1.msra.mxu0 0.0
    %456 = vmatprep.mubr.f32.mxu0 0.0
    %457 = vmatmul.mubr.f32.gmra.mrb[0].mxu0 %v391
    %v458 = vpop.f32.mrb[0].mxu0
    %v459 = vadd.f32 0.0, %v458
    %v460 = vpop.f32.mrb[0].mxu0
    %461 = vdwg.mxu0
    %v462 = vmul.f32 %v377, %v377
    %v463 = vmul.f32 %v378, %v378
    %v464 = vmul.f32 %v379, %v379
    %v465 = vmul.f32 %v380, %v380
    %v466 = vmul.f32 %v381, %v381
    %v467 = vadd.f32 %v462, %v463
    %v468 = vadd.f32 %v467, %v464
    %v469 = vadd.f32 %v468, %v465
    %v470 = vadd.f32 %v469, %v466
    %v471 = vrot.slane %v470, 4
    %v472 = vadd.f32 %v470, %v471
    %v473 = vrot.slane %v472, 2
    %v474 = vadd.f32 %v472, %v473
    %v475 = vrot.slane %v474, 1
    %v476 = vadd.f32 %v474, %v475
    %477 = vmatprep.subr.mxu0 0.0
    %478 = vmatpush1.msra.mxu0 %v84
    %479 = vmatprep.subr.mxu0 0.0
    %480 = vmatpush1.msra.mxu0 %v85
    %481 = vmatprep.subr.mxu0 0.0
    %482 = vmatpush1.msra.mxu0 %v86
    %483 = vmatprep.subr.mxu0 0.0
    %484 = vmatpush1.msra.mxu0 %v87
    %485 = vmatprep.subr.mxu0 0.0
    %486 = vmatpush1.msra.mxu0 %v88
    %487 = vmatprep.subr.mxu0 0.0
    %488 = vmatpush1.msra.mxu0 %v89
    %489 = vmatprep.subr.mxu0 0.0
    %490 = vmatpush1.msra.mxu0 %v90
    %491 = vmatprep.subr.mxu0 0.0
    %492 = vmatpush1.msra.mxu0 %v91
    %493 = vmatprep.subr.mxu0 0.0
    %494 = vmatpush1.msra.mxu0 %v92
    %495 = vmatprep.subr.mxu0 0.0
    %496 = vmatpush1.msra.mxu0 %v93
    %497 = vmatprep.subr.mxu0 0.0
    %498 = vmatpush1.msra.mxu0 %v94
    %499 = vmatprep.subr.mxu0 0.0
    %500 = vmatpush1.msra.mxu0 %v95
    %501 = vmatprep.subr.mxu0 0.0
    %502 = vmatpush1.msra.mxu0 %v96
    %503 = vmatprep.subr.mxu0 0.0
    %504 = vmatpush1.msra.mxu0 %v97
    %505 = vmatprep.subr.mxu0 0.0
    %506 = vmatpush1.msra.mxu0 %v98
    %507 = vmatprep.subr.mxu0 0.0
    %508 = vmatpush1.msra.mxu0 %v99
    %509 = vmatprep.subr.mxu0 0.0
    %510 = vmatpush1.msra.mxu0 0.0
    %511 = vmatprep.subr.mxu0 0.0
    %512 = vmatpush1.msra.mxu0 0.0
    %513 = vmatprep.subr.mxu0 0.0
    %514 = vmatpush1.msra.mxu0 0.0
    %515 = vmatprep.subr.mxu0 0.0
    %516 = vmatpush1.msra.mxu0 0.0
    %517 = vmatprep.subr.mxu0 0.0
    %518 = vmatpush1.msra.mxu0 0.0
    %519 = vmatprep.subr.mxu0 0.0
    %520 = vmatpush1.msra.mxu0 0.0
    %521 = vmatprep.subr.mxu0 0.0
    %522 = vmatpush1.msra.mxu0 0.0
    %523 = vmatprep.subr.mxu0 0.0
    %524 = vmatpush1.msra.mxu0 0.0
    %525 = vmatprep.subr.mxu0 0.0
    %526 = vmatpush1.msra.mxu0 0.0
    %527 = vmatprep.subr.mxu0 0.0
    %528 = vmatpush1.msra.mxu0 0.0
    %529 = vmatprep.subr.mxu0 0.0
    %530 = vmatpush1.msra.mxu0 0.0
    %531 = vmatprep.subr.mxu0 0.0
    %532 = vmatpush1.msra.mxu0 0.0
    %533 = vmatprep.subr.mxu0 0.0
    %534 = vmatpush1.msra.mxu0 0.0
    %535 = vmatprep.subr.mxu0 0.0
    %536 = vmatpush1.msra.mxu0 0.0
    %537 = vmatprep.subr.mxu0 0.0
    %538 = vmatpush1.msra.mxu0 0.0
    %539 = vmatprep.subr.mxu0 0.0
    %540 = vmatpush1.msra.mxu0 0.0
    %541 = vmatprep.mubr.f32.mxu0 0.0
    %542 = vmatmul.mubr.f32.gmra.mrb[0].mxu0 %v476
    %v543 = vpop.f32.mrb[0].mxu0
    %v544 = vadd.f32 0.0, %v543
    %v545 = vpop.f32.mrb[0].mxu0
    %546 = vdwg.mxu0
    %v547 = vmul.f32 %v459, %v459
    %v548 = vsub.f32 %v544, %v547
    %v549 = vld [vmem:[%s3] sm:$0x1]
    %v550 = vadd.f32 %v548, 1e-05
    %v551 = vrsqrt.pop %v550
    %v552 = vmul.f32 %v549, %v551
    %v553 = vld [vmem:[%s4] sm:$0x1]
    %v554 = vmul.f32 %v459, %v552
    %v555 = vsub.f32 %v553, %v554
    %v557 = vlaneseq
    %v558 = vshrl.u32 %v557, 7
    %v559 = vsub.s32 0, %v558
    %v560 = vrot.slane %v552, %v559
    %v562 = vmul.f32 %v329, %v560
    %v563 = vmul.f32 %v334, %v560
    %v564 = vmul.f32 %v339, %v560
    %v565 = vmul.f32 %v344, %v560
    %v566 = vmul.f32 %v349, %v560
    %v568 = vlaneseq
    %v569 = vshrl.u32 %v568, 7
    %v570 = vsub.s32 0, %v569
    %v571 = vrot.slane %v555, %v570
    %v573 = vadd.f32 %v562, %v571
    %v574 = vadd.f32 %v563, %v571
    %v575 = vadd.f32 %v564, %v571
    %v576 = vadd.f32 %v565, %v571
    %v577 = vadd.f32 %v566, %v571
    %v578 = vmax.f32 %v573, 0.0
    %v579 = vmax.f32 %v574, 0.0
    %v580 = vmax.f32 %v575, 0.0
    %v581 = vmax.f32 %v576, 0.0
    %v582 = vmax.f32 %v577, 0.0
    %v583 = vmul.f32 %v578, %v355
    %v584 = vmul.f32 %v579, %v360
    %v585 = vmul.f32 %v580, %v365
    %v586 = vmul.f32 %v581, %v370
    %v587 = vmul.f32 %v582, %v375
    %v588 = vrot.slane %v583, 7
    %v589 = vrot.slane %v584, 7
    %v590 = vrot.slane %v585, 7
    %v591 = vrot.slane %v586, 7
    %v592 = vrot.slane %v587, 7
    %v593 = vsel %vm107, %v591, %v592
    %v594 = vsel %vm107, %v590, %v591
    %v595 = vsel %vm107, %v589, %v590
    %v596 = vsel %vm107, %v588, %v589
    %v597 = vsel %vm107, %v592, %v588
    %v598 = vrot.slane %v583, 1
    %v599 = vrot.slane %v584, 1
    %v600 = vrot.slane %v585, 1
    %v601 = vrot.slane %v586, 1
    %v602 = vrot.slane %v587, 1
    %v603 = vsel %vm118, %v601, %v602
    %v604 = vsel %vm118, %v600, %v601
    %v605 = vsel %vm118, %v599, %v600
    %v606 = vsel %vm118, %v598, %v599
    %v607 = vsel %vm118, %v602, %v598
    %v608 = vld [vmem:[#allocation5] sm:$0xff]
    %v609 = vld [vmem:[#allocation5 + $0x8] sm:$0xff]
    %v610 = vld [vmem:[#allocation5 + $0x10] sm:$0xff]
    %v611 = vld [vmem:[#allocation5 + $0x18] sm:$0xff]
    %v612 = vld [vmem:[#allocation5 + $0x20] sm:$0xff]
    %v613 = vld [vmem:[#allocation5 + $0x28] sm:$0xff]
    %v614 = vld [vmem:[#allocation5 + $0x30] sm:$0xff]
    %v615 = vld [vmem:[#allocation5 + $0x38] sm:$0xff]
    %v616 = vld [vmem:[#allocation5 + $0x40] sm:$0xff]
    %v617 = vld [vmem:[#allocation5 + $0x48] sm:$0xff]
    %v618 = vld [vmem:[#allocation5 + $0x50] sm:$0xff]
    %v619 = vld [vmem:[#allocation5 + $0x58] sm:$0xff]
    %v620 = vld [vmem:[#allocation5 + $0x60] sm:$0xff]
    %v621 = vld [vmem:[#allocation5 + $0x68] sm:$0xff]
    %v622 = vld [vmem:[#allocation5 + $0x70] sm:$0xff]
    %v623 = vld [vmem:[#allocation5 + $0x78] sm:$0xff]
    %v624 = vld [vmem:[#allocation5 + $0x80] sm:$0xff]
    %v625 = vld [vmem:[#allocation5 + $0x88] sm:$0xff]
    %v626 = vld [vmem:[#allocation5 + $0x90] sm:$0xff]
    %v627 = vld [vmem:[#allocation5 + $0x98] sm:$0xff]
    %v628 = vld [vmem:[#allocation5 + $0xa0] sm:$0xff]
    %v629 = vld [vmem:[#allocation5 + $0xa8] sm:$0xff]
    %v630 = vld [vmem:[#allocation5 + $0xb0] sm:$0xff]
    %v631 = vld [vmem:[#allocation5 + $0xb8] sm:$0xff]
    %v632 = vld [vmem:[#allocation5 + $0xc0] sm:$0xff]
    %v633 = vld [vmem:[#allocation5 + $0xc8] sm:$0xff]
    %v634 = vld [vmem:[#allocation5 + $0xd0] sm:$0xff]
    %v635 = vld [vmem:[#allocation5 + $0xd8] sm:$0xff]
    %v636 = vld [vmem:[#allocation5 + $0xe0] sm:$0xff]
    %v637 = vld [vmem:[#allocation5 + $0xe8] sm:$0xff]
    %v638 = vld [vmem:[#allocation5 + $0xf0] sm:$0xff]
    %v639 = vld [vmem:[#allocation5 + $0xf8] sm:$0xff]
    %v640 = vld [vmem:[#allocation5 + $0x100] sm:$0xff]
    %v641 = vld [vmem:[#allocation5 + $0x108] sm:$0xff]
    %v642 = vld [vmem:[#allocation5 + $0x110] sm:$0xff]
    %v643 = vld [vmem:[#allocation5 + $0x118] sm:$0xff]
    %v644 = vld [vmem:[#allocation5 + $0x120] sm:$0xff]
    %v645 = vld [vmem:[#allocation5 + $0x128] sm:$0xff]
    %v646 = vld [vmem:[#allocation5 + $0x130] sm:$0xff]
    %v647 = vld [vmem:[#allocation5 + $0x138] sm:$0xff]
    %v648 = vld [vmem:[#allocation5 + $0x140] sm:$0xff]
    %v649 = vld [vmem:[#allocation5 + $0x148] sm:$0xff]
    %v650 = vld [vmem:[#allocation5 + $0x150] sm:$0xff]
    %v651 = vld [vmem:[#allocation5 + $0x158] sm:$0xff]
    %v652 = vld [vmem:[#allocation5 + $0x160] sm:$0xff]
    %v653 = vld [vmem:[#allocation5 + $0x168] sm:$0xff]
    %v654 = vld [vmem:[#allocation5 + $0x170] sm:$0xff]
    %v655 = vld [vmem:[#allocation5 + $0x178] sm:$0xff]
    %656 = vmatprep.subr.mxu0 0.0
    %657 = vmatpush1.msra.mxu0 %v608
    %658 = vmatprep.subr.mxu0 0.0
    %659 = vmatpush1.msra.mxu0 %v609
    %660 = vmatprep.subr.mxu0 0.0
    %661 = vmatpush1.msra.mxu0 %v610
    %662 = vmatprep.subr.mxu0 0.0
    %663 = vmatpush1.msra.mxu0 %v611
    %664 = vmatprep.subr.mxu0 0.0
    %665 = vmatpush1.msra.mxu0 %v612
    %666 = vmatprep.subr.mxu0 0.0
    %667 = vmatpush1.msra.mxu0 %v613
    %668 = vmatprep.subr.mxu0 0.0
    %669 = vmatpush1.msra.mxu0 %v614
    %670 = vmatprep.subr.mxu0 0.0
    %671 = vmatpush1.msra.mxu0 %v615
    %672 = vmatprep.subr.mxu0 0.0
    %673 = vmatpush1.msra.mxu0 %v616
    %674 = vmatprep.subr.mxu0 0.0
    %675 = vmatpush1.msra.mxu0 %v617
    %676 = vmatprep.subr.mxu0 0.0
    %677 = vmatpush1.msra.mxu0 %v618
    %678 = vmatprep.subr.mxu0 0.0
    %679 = vmatpush1.msra.mxu0 %v619
    %680 = vmatprep.subr.mxu0 0.0
    %681 = vmatpush1.msra.mxu0 %v620
    %682 = vmatprep.subr.mxu0 0.0
    %683 = vmatpush1.msra.mxu0 %v621
    %684 = vmatprep.subr.mxu0 0.0
    %685 = vmatpush1.msra.mxu0 %v622
    %686 = vmatprep.subr.mxu0 0.0
    %687 = vmatpush1.msra.mxu0 %v623
    %688 = vmatprep.subr.mxu0 0.0
    %689 = vmatpush1.msra.mxu0 %v624
    %690 = vmatprep.subr.mxu0 0.0
    %691 = vmatpush1.msra.mxu0 %v625
    %692 = vmatprep.subr.mxu0 0.0
    %693 = vmatpush1.msra.mxu0 %v626
    %694 = vmatprep.subr.mxu0 0.0
    %695 = vmatpush1.msra.mxu0 %v627
    %696 = vmatprep.subr.mxu0 0.0
    %697 = vmatpush1.msra.mxu0 %v628
    %698 = vmatprep.subr.mxu0 0.0
    %699 = vmatpush1.msra.mxu0 %v629
    %700 = vmatprep.subr.mxu0 0.0
    %701 = vmatpush1.msra.mxu0 %v630
    %702 = vmatprep.subr.mxu0 0.0
    %703 = vmatpush1.msra.mxu0 %v631
    %704 = vmatprep.subr.mxu0 0.0
    %705 = vmatpush1.msra.mxu0 %v632
    %706 = vmatprep.subr.mxu0 0.0
    %707 = vmatpush1.msra.mxu0 %v633
    %708 = vmatprep.subr.mxu0 0.0
    %709 = vmatpush1.msra.mxu0 %v634
    %710 = vmatprep.subr.mxu0 0.0
    %711 = vmatpush1.msra.mxu0 %v635
    %712 = vmatprep.subr.mxu0 0.0
    %713 = vmatpush1.msra.mxu0 %v636
    %714 = vmatprep.subr.mxu0 0.0
    %715 = vmatpush1.msra.mxu0 %v637
    %716 = vmatprep.subr.mxu0 0.0
    %717 = vmatpush1.msra.mxu0 %v638
    %718 = vmatprep.subr.mxu0 0.0
    %719 = vmatpush1.msra.mxu0 %v639
    %720 = vmatprep.mubr.f32.mxu0 %v583
    %721 = vmatmul.mubr.f32.gmra.mrb[0].mxu0 %v597
    %v722 = vpop.f32.mrb[0].mxu0
    %v723 = vadd.f32 0.0, %v722
    %v724 = vpop.f32.mrb[0].mxu0
    %725 = vmatprep.mubr.f32.mxu0 %v584
    %726 = vmatmul.mubr.f32.gmra.mrb[0].mxu0 %v596
    %v727 = vpop.f32.mrb[0].mxu0
    %v728 = vadd.f32 0.0, %v727
    %v729 = vpop.f32.mrb[0].mxu0
    %730 = vmatprep.mubr.f32.mxu0 %v585
    %731 = vmatmul.mubr.f32.gmra.mrb[0].mxu0 %v595
    %v732 = vpop.f32.mrb[0].mxu0
    %v733 = vadd.f32 0.0, %v732
    %v734 = vpop.f32.mrb[0].mxu0
    %735 = vmatprep.mubr.f32.mxu0 %v586
    %736 = vmatmul.mubr.f32.gmra.mrb[0].mxu0 %v594
    %v737 = vpop.f32.mrb[0].mxu0
    %v738 = vadd.f32 0.0, %v737
    %v739 = vpop.f32.mrb[0].mxu0
    %740 = vmatprep.mubr.f32.mxu0 %v587
    %741 = vmatmul.mubr.f32.gmra.mrb[0].mxu0 %v593
    %v742 = vpop.f32.mrb[0].mxu0
    %v743 = vadd.f32 0.0, %v742
    %v744 = vpop.f32.mrb[0].mxu0
    %745 = vdwg.mxu0
    %746 = vmatprep.subr.mxu0 0.0
    %747 = vmatpush1.msra.mxu0 %v640
    %748 = vmatprep.subr.mxu0 0.0
    %749 = vmatpush1.msra.mxu0 %v641
    %750 = vmatprep.subr.mxu0 0.0
    %751 = vmatpush1.msra.mxu0 %v642
    %752 = vmatprep.subr.mxu0 0.0
    %753 = vmatpush1.msra.mxu0 %v643
    %754 = vmatprep.subr.mxu0 0.0
    %755 = vmatpush1.msra.mxu0 %v644
    %756 = vmatprep.subr.mxu0 0.0
    %757 = vmatpush1.msra.mxu0 %v645
    %758 = vmatprep.subr.mxu0 0.0
    %759 = vmatpush1.msra.mxu0 %v646
    %760 = vmatprep.subr.mxu0 0.0
    %761 = vmatpush1.msra.mxu0 %v647
    %762 = vmatprep.subr.mxu0 0.0
    %763 = vmatpush1.msra.mxu0 %v648
    %764 = vmatprep.subr.mxu0 0.0
    %765 = vmatpush1.msra.mxu0 %v649
    %766 = vmatprep.subr.mxu0 0.0
    %767 = vmatpush1.msra.mxu0 %v650
    %768 = vmatprep.subr.mxu0 0.0
    %769 = vmatpush1.msra.mxu0 %v651
    %770 = vmatprep.subr.mxu0 0.0
    %771 = vmatpush1.msra.mxu0 %v652
    %772 = vmatprep.subr.mxu0 0.0
    %773 = vmatpush1.msra.mxu0 %v653
    %774 = vmatprep.subr.mxu0 0.0
    %775 = vmatpush1.msra.mxu0 %v654
    %776 = vmatprep.subr.mxu0 0.0
    %777 = vmatpush1.msra.mxu0 %v655
    %778 = vmatprep.subr.mxu0 0.0
    %779 = vmatpush1.msra.mxu0 0.0
    %780 = vmatprep.subr.mxu0 0.0
    %781 = vmatpush1.msra.mxu0 0.0
    %782 = vmatprep.subr.mxu0 0.0
    %783 = vmatpush1.msra.mxu0 0.0
    %784 = vmatprep.subr.mxu0 0.0
    %785 = vmatpush1.msra.mxu0 0.0
    %786 = vmatprep.subr.mxu0 0.0
    %787 = vmatpush1.msra.mxu0 0.0
    %788 = vmatprep.subr.mxu0 0.0
    %789 = vmatpush1.msra.mxu0 0.0
    %790 = vmatprep.subr.mxu0 0.0
    %791 = vmatpush1.msra.mxu0 0.0
    %792 = vmatprep.subr.mxu0 0.0
    %793 = vmatpush1.msra.mxu0 0.0
    %794 = vmatprep.subr.mxu0 0.0
    %795 = vmatpush1.msra.mxu0 0.0
    %796 = vmatprep.subr.mxu0 0.0
    %797 = vmatpush1.msra.mxu0 0.0
    %798 = vmatprep.subr.mxu0 0.0
    %799 = vmatpush1.msra.mxu0 0.0
    %800 = vmatprep.subr.mxu0 0.0
    %801 = vmatpush1.msra.mxu0 0.0
    %802 = vmatprep.subr.mxu0 0.0
    %803 = vmatpush1.msra.mxu0 0.0
    %804 = vmatprep.subr.mxu0 0.0
    %805 = vmatpush1.msra.mxu0 0.0
    %806 = vmatprep.subr.mxu0 0.0
    %807 = vmatpush1.msra.mxu0 0.0
    %808 = vmatprep.subr.mxu0 0.0
    %809 = vmatpush1.msra.mxu0 0.0
    %810 = vmatprep.mubr.f32.mxu0 0.0
    %811 = vmatmul.mubr.f32.gmra.mrb[0].mxu0 %v606
    %v812 = vpop.f32.mrb[0].mxu0
    %v813 = vadd.f32 %v723, %v812
    %v814 = vpop.f32.mrb[0].mxu0
    %815 = vmatprep.mubr.f32.mxu0 0.0
    %816 = vmatmul.mubr.f32.gmra.mrb[0].mxu0 %v605
    %v817 = vpop.f32.mrb[0].mxu0
    %v818 = vadd.f32 %v728, %v817
    %v819 = vpop.f32.mrb[0].mxu0
    %820 = vmatprep.mubr.f32.mxu0 0.0
    %821 = vmatmul.mubr.f32.gmra.mrb[0].mxu0 %v604
    %v822 = vpop.f32.mrb[0].mxu0
    %v823 = vadd.f32 %v733, %v822
    %v824 = vpop.f32.mrb[0].mxu0
    %825 = vmatprep.mubr.f32.mxu0 0.0
    %826 = vmatmul.mubr.f32.gmra.mrb[0].mxu0 %v603
    %v827 = vpop.f32.mrb[0].mxu0
    %v828 = vadd.f32 %v738, %v827
    %v829 = vpop.f32.mrb[0].mxu0
    %830 = vmatprep.mubr.f32.mxu0 0.0
    %831 = vmatmul.mubr.f32.gmra.mrb[0].mxu0 %v607
    %v832 = vpop.f32.mrb[0].mxu0
    %v833 = vadd.f32 %v743, %v832
    %v834 = vpop.f32.mrb[0].mxu0
    %835 = vdwg.mxu0
    %v836 = vmul.f32 %v813, %v355
    %v837 = vmul.f32 %v818, %v360
    %v838 = vmul.f32 %v823, %v365
    %v839 = vmul.f32 %v828, %v370
    %v840 = vmul.f32 %v833, %v375
    %v841 = vadd.f32 %v836, %v837
    %v842 = vadd.f32 %v841, %v838
    %v843 = vadd.f32 %v842, %v839
    %v844 = vadd.f32 %v843, %v840
    %v845 = vrot.slane %v844, 4
    %v846 = vadd.f32 %v844, %v845
    %v847 = vrot.slane %v846, 2
    %v848 = vadd.f32 %v846, %v847
    %v849 = vrot.slane %v848, 1
    %v850 = vadd.f32 %v848, %v849
    %851 = vmatprep.subr.mxu0 0.0
    %852 = vmatpush1.msra.mxu0 %v84
    %853 = vmatprep.subr.mxu0 0.0
    %854 = vmatpush1.msra.mxu0 %v85
    %855 = vmatprep.subr.mxu0 0.0
    %856 = vmatpush1.msra.mxu0 %v86
    %857 = vmatprep.subr.mxu0 0.0
    %858 = vmatpush1.msra.mxu0 %v87
    %859 = vmatprep.subr.mxu0 0.0
    %860 = vmatpush1.msra.mxu0 %v88
    %861 = vmatprep.subr.mxu0 0.0
    %862 = vmatpush1.msra.mxu0 %v89
    %863 = vmatprep.subr.mxu0 0.0
    %864 = vmatpush1.msra.mxu0 %v90
    %865 = vmatprep.subr.mxu0 0.0
    %866 = vmatpush1.msra.mxu0 %v91
    %867 = vmatprep.subr.mxu0 0.0
    %868 = vmatpush1.msra.mxu0 %v92
    %869 = vmatprep.subr.mxu0 0.0
    %870 = vmatpush1.msra.mxu0 %v93
    %871 = vmatprep.subr.mxu0 0.0
    %872 = vmatpush1.msra.mxu0 %v94
    %873 = vmatprep.subr.mxu0 0.0
    %874 = vmatpush1.msra.mxu0 %v95
    %875 = vmatprep.subr.mxu0 0.0
    %876 = vmatpush1.msra.mxu0 %v96
    %877 = vmatprep.subr.mxu0 0.0
    %878 = vmatpush1.msra.mxu0 %v97
    %879 = vmatprep.subr.mxu0 0.0
    %880 = vmatpush1.msra.mxu0 %v98
    %881 = vmatprep.subr.mxu0 0.0
    %882 = vmatpush1.msra.mxu0 %v99
    %883 = vmatprep.subr.mxu0 0.0
    %884 = vmatpush1.msra.mxu0 0.0
    %885 = vmatprep.subr.mxu0 0.0
    %886 = vmatpush1.msra.mxu0 0.0
    %887 = vmatprep.subr.mxu0 0.0
    %888 = vmatpush1.msra.mxu0 0.0
    %889 = vmatprep.subr.mxu0 0.0
    %890 = vmatpush1.msra.mxu0 0.0
    %891 = vmatprep.subr.mxu0 0.0
    %892 = vmatpush1.msra.mxu0 0.0
    %893 = vmatprep.subr.mxu0 0.0
    %894 = vmatpush1.msra.mxu0 0.0
    %895 = vmatprep.subr.mxu0 0.0
    %896 = vmatpush1.msra.mxu0 0.0
    %897 = vmatprep.subr.mxu0 0.0
    %898 = vmatpush1.msra.mxu0 0.0
    %899 = vmatprep.subr.mxu0 0.0
    %900 = vmatpush1.msra.mxu0 0.0
    %901 = vmatprep.subr.mxu0 0.0
    %902 = vmatpush1.msra.mxu0 0.0
    %903 = vmatprep.subr.mxu0 0.0
    %904 = vmatpush1.msra.mxu0 0.0
    %905 = vmatprep.subr.mxu0 0.0
    %906 = vmatpush1.msra.mxu0 0.0
    %907 = vmatprep.subr.mxu0 0.0
    %908 = vmatpush1.msra.mxu0 0.0
    %909 = vmatprep.subr.mxu0 0.0
    %910 = vmatpush1.msra.mxu0 0.0
    %911 = vmatprep.subr.mxu0 0.0
    %912 = vmatpush1.msra.mxu0 0.0
    %913 = vmatprep.subr.mxu0 0.0
    %914 = vmatpush1.msra.mxu0 0.0
    %915 = vmatprep.mubr.f32.mxu0 0.0
    %916 = vmatmul.mubr.f32.gmra.mrb[0].mxu0 %v850
    %v917 = vpop.f32.mrb[0].mxu0
    %v918 = vadd.f32 0.0, %v917
    %v919 = vpop.f32.mrb[0].mxu0
    %920 = vdwg.mxu0
    %v921 = vmul.f32 %v836, %v836
    %v922 = vmul.f32 %v837, %v837
    %v923 = vmul.f32 %v838, %v838
    %v924 = vmul.f32 %v839, %v839
    %v925 = vmul.f32 %v840, %v840
    %v926 = vadd.f32 %v921, %v922
    %v927 = vadd.f32 %v926, %v923
    %v928 = vadd.f32 %v927, %v924
    %v929 = vadd.f32 %v928, %v925
    %v930 = vrot.slane %v929, 4
    %v931 = vadd.f32 %v929, %v930
    %v932 = vrot.slane %v931, 2
    %v933 = vadd.f32 %v931, %v932
    %v934 = vrot.slane %v933, 1
    %v935 = vadd.f32 %v933, %v934
    %936 = vmatprep.subr.mxu0 0.0
    %937 = vmatpush1.msra.mxu0 %v84
    %938 = vmatprep.subr.mxu0 0.0
    %939 = vmatpush1.msra.mxu0 %v85
    %940 = vmatprep.subr.mxu0 0.0
    %941 = vmatpush1.msra.mxu0 %v86
    %942 = vmatprep.subr.mxu0 0.0
    %943 = vmatpush1.msra.mxu0 %v87
    %944 = vmatprep.subr.mxu0 0.0
    %945 = vmatpush1.msra.mxu0 %v88
    %946 = vmatprep.subr.mxu0 0.0
    %947 = vmatpush1.msra.mxu0 %v89
    %948 = vmatprep.subr.mxu0 0.0
    %949 = vmatpush1.msra.mxu0 %v90
    %950 = vmatprep.subr.mxu0 0.0
    %951 = vmatpush1.msra.mxu0 %v91
    %952 = vmatprep.subr.mxu0 0.0
    %953 = vmatpush1.msra.mxu0 %v92
    %954 = vmatprep.subr.mxu0 0.0
    %955 = vmatpush1.msra.mxu0 %v93
    %956 = vmatprep.subr.mxu0 0.0
    %957 = vmatpush1.msra.mxu0 %v94
    %958 = vmatprep.subr.mxu0 0.0
    %959 = vmatpush1.msra.mxu0 %v95
    %960 = vmatprep.subr.mxu0 0.0
    %961 = vmatpush1.msra.mxu0 %v96
    %962 = vmatprep.subr.mxu0 0.0
    %963 = vmatpush1.msra.mxu0 %v97
    %964 = vmatprep.subr.mxu0 0.0
    %965 = vmatpush1.msra.mxu0 %v98
    %966 = vmatprep.subr.mxu0 0.0
    %967 = vmatpush1.msra.mxu0 %v99
    %968 = vmatprep.subr.mxu0 0.0
    %969 = vmatpush1.msra.mxu0 0.0
    %970 = vmatprep.subr.mxu0 0.0
    %971 = vmatpush1.msra.mxu0 0.0
    %972 = vmatprep.subr.mxu0 0.0
    %973 = vmatpush1.msra.mxu0 0.0
    %974 = vmatprep.subr.mxu0 0.0
    %975 = vmatpush1.msra.mxu0 0.0
    %976 = vmatprep.subr.mxu0 0.0
    %977 = vmatpush1.msra.mxu0 0.0
    %978 = vmatprep.subr.mxu0 0.0
    %979 = vmatpush1.msra.mxu0 0.0
    %980 = vmatprep.subr.mxu0 0.0
    %981 = vmatpush1.msra.mxu0 0.0
    %982 = vmatprep.subr.mxu0 0.0
    %983 = vmatpush1.msra.mxu0 0.0
    %984 = vmatprep.subr.mxu0 0.0
    %985 = vmatpush1.msra.mxu0 0.0
    %986 = vmatprep.subr.mxu0 0.0
    %987 = vmatpush1.msra.mxu0 0.0
    %988 = vmatprep.subr.mxu0 0.0
    %989 = vmatpush1.msra.mxu0 0.0
    %990 = vmatprep.subr.mxu0 0.0
    %991 = vmatpush1.msra.mxu0 0.0
    %992 = vmatprep.subr.mxu0 0.0
    %993 = vmatpush1.msra.mxu0 0.0
    %994 = vmatprep.subr.mxu0 0.0
    %995 = vmatpush1.msra.mxu0 0.0
    %996 = vmatprep.subr.mxu0 0.0
    %997 = vmatpush1.msra.mxu0 0.0
    %998 = vmatprep.subr.mxu0 0.0
    %999 = vmatpush1.msra.mxu0 0.0
    %1000 = vmatprep.mubr.f32.mxu0 0.0
    %1001 = vmatmul.mubr.f32.gmra.mrb[0].mxu0 %v935
    %v1002 = vpop.f32.mrb[0].mxu0
    %v1003 = vadd.f32 0.0, %v1002
    %v1004 = vpop.f32.mrb[0].mxu0
    %1005 = vdwg.mxu0
    %v1006 = vmul.f32 %v918, %v918
    %v1007 = vsub.f32 %v1003, %v1006
    %v1008 = vld [vmem:[%s6] sm:$0x1]
    %v1009 = vadd.f32 %v1007, 1e-05
    %v1010 = vrsqrt.pop %v1009
    %v1011 = vmul.f32 %v1008, %v1010
    %v1012 = vld [vmem:[%s7] sm:$0x1]
    %v1013 = vmul.f32 %v918, %v1011
    %v1014 = vsub.f32 %v1012, %v1013
    %v1016 = vlaneseq
    %v1017 = vshrl.u32 %v1016, 7
    %v1018 = vsub.s32 0, %v1017
    %v1019 = vrot.slane %v1011, %v1018
    %v1021 = vmul.f32 %v813, %v1019
    %v1022 = vmul.f32 %v818, %v1019
    %v1023 = vmul.f32 %v823, %v1019
    %v1024 = vmul.f32 %v828, %v1019
    %v1025 = vmul.f32 %v833, %v1019
    %v1027 = vlaneseq
    %v1028 = vshrl.u32 %v1027, 7
    %v1029 = vsub.s32 0, %v1028
    %v1030 = vrot.slane %v1014, %v1029
    %v1032 = vadd.f32 %v1021, %v1030
    %v1033 = vadd.f32 %v1022, %v1030
    %v1034 = vadd.f32 %v1023, %v1030
    %v1035 = vadd.f32 %v1024, %v1030
    %v1036 = vadd.f32 %v1025, %v1030
    %v1037 = vadd.f32 %v1032, %v74
    %v1038 = vadd.f32 %v1033, %v75
    %v1039 = vadd.f32 %v1034, %v76
    %v1040 = vadd.f32 %v1035, %v77
    %v1041 = vadd.f32 %v1036, %v78
    %v1042 = vmax.f32 %v1037, 0.0
    %v1043 = vmax.f32 %v1038, 0.0
    %v1044 = vmax.f32 %v1039, 0.0
    %v1045 = vmax.f32 %v1040, 0.0
    %v1046 = vmax.f32 %v1041, 0.0
    %1047 = vst [vmem:[#allocation8] sm:$0xff] %v1042
    %1048 = vst [vmem:[#allocation8 + $0x8] sm:$0xff] %v1043
    %1049 = vst [vmem:[#allocation8 + $0x10] sm:$0xff] %v1044
    %1050 = vst [vmem:[#allocation8 + $0x18] sm:$0xff] %v1045
    %1051 = vst [vmem:[#allocation8 + $0x20] sm:$0xff] %v1046
    // Predicated region
    $region50: #{tpu_custom_call.1} parent=1 // pred_check
      _
    $region51: #{tpu_custom_call.1} parent=1 // pred_check_branch
      %1053 = sbr.rel (0) target = $region53
    $region52: #{tpu_custom_call.1} parent=1 // pred_region
      %s1055 = ssub.s32 640, 640
      %1056 = vsyncadd [#allocation4], %s1055
      %s1057 = sshll.u32 [#allocation8], 4
      %s1058 = int_to_ptr.vmem [resolvable:$true] %s1057
      %1063 = dma.vmem_to_hbm [thread:$0]  %s1058, 640, %s9, [#allocation4], 128, 128, 8
    $region53: #{tpu_custom_call.1} parent=1 // pred_fallthru
      _
    // Predicated region
    $region54: #{tpu_custom_call.1} parent=1 // pred_check
      _
    $region55: #{tpu_custom_call.1} parent=1 // pred_check_branch
      %1065 = sbr.rel (0) target = $region57
    $region56: #{tpu_custom_call.1} parent=1 // pred_region
      %1066 = dma.done [#allocation4], 640
    $region57: #{tpu_custom_call.1} parent=1 // pred_fallthru
      _
    %1067 = vsyncpa [#allocation3], 1
    %1068 = vsyncpa [#allocation6], 1
    %1069 = vsyncpa [#allocation4], 1

</llo_original>
